<compile_context>
chip_gen: v5e
topology: v5e:2x2
jax: 0.10.0
libtpu: 0.0.40
codegen_flags: <defaults>
</compile_context>

<pallas_src>
import jax
import jax.numpy as jnp
from jax.experimental import pallas as pl
from jax.experimental.pallas import tpu as pltpu

BN_EPS = 1e-5


def _mlp_ms_kernel(x_ref, w1_ref, b1_ref, gamma_ref, beta_ref, w2_ref, b2_ref, o_ref):
    # x_ref:  (LB, N, Din) f32    w1_ref: (LB, Din, H) bf16
    # b1/gamma/beta: (LB, 1, H) f32
    # w2_ref: (LB, H, Dout) bf16  b2_ref: (LB, 1, Dout) f32
    # o_ref:  (LB, N, Dout) f32
    x = x_ref[...].astype(jnp.bfloat16)

    # First Linear (batched over the LB levels in this block): MXU, f32 accumulate.
    h = jnp.einsum("lnd,ldh->lnh", x, w1_ref[...],
                   preferred_element_type=jnp.float32)
    h = h + b1_ref[...]                                   # (LB, N, H) f32

    # BatchNorm1d (training mode): one-pass batch statistics over N.
    n = h.shape[1]
    inv_n = 1.0 / n
    s = jnp.sum(h, axis=1, keepdims=True)                 # (LB, 1, H)  XLU reduce
    s2 = jnp.sum(h * h, axis=1, keepdims=True)            # (LB, 1, H)
    mean = s * inv_n
    var = jnp.maximum(s2 * inv_n - mean * mean, 0.0)      # biased var, clamp cancellation
    # Fold normalization + affine into one scale/shift computed on the small
    # (LB,1,H) tensors; apply to the big (LB,N,H) tensor with 1 mul + 1 add.
    scale = gamma_ref[...] * jax.lax.rsqrt(var + BN_EPS)  # (LB, 1, H)  EUP rsqrt
    shift = beta_ref[...] - mean * scale                  # (LB, 1, H)
    h = h * scale + shift

    # ReLU (f32 on VPU).
    h = jnp.maximum(h, 0.0)

    # Second Linear.
    y = jnp.einsum("lnh,lhd->lnd", h.astype(jnp.bfloat16), w2_ref[...],
                   preferred_element_type=jnp.float32)
    o_ref[...] = (y + b2_ref[...]).astype(o_ref.dtype)


def mlp_ms_forward(x, params, *, levels_per_step=None):
    """x: stacked (L, N, Din) f32; returns stacked (L, N, Dout) f32."""
    L, N, Din = x.shape
    H = params["w1"].shape[2]
    Dout = params["w2"].shape[2]

    # Default: at most 2 grid steps -> minimal per-step overhead on 1-TC chips
    # while still giving v7x's two TensorCores one step each.
    if levels_per_step is None:
        levels_per_step = max(1, L // 2) if L % 2 == 0 else 1
    if L % levels_per_step != 0:
        levels_per_step = 1
    lb = levels_per_step
    grid = (L // lb,)

    return pl.pallas_call(
        _mlp_ms_kernel,
        out_shape=jax.ShapeDtypeStruct((L, N, Dout), jnp.float32),
        grid_spec=pltpu.PrefetchScalarGridSpec(
            num_scalar_prefetch=0,
            grid=grid,
            in_specs=[
                pl.BlockSpec((lb, N, Din), lambda i: (i, 0, 0)),    # x
                pl.BlockSpec((lb, Din, H), lambda i: (i, 0, 0)),    # W1 (pre-transposed, bf16)
                pl.BlockSpec((lb, 1, H), lambda i: (i, 0, 0)),      # b1
                pl.BlockSpec((lb, 1, H), lambda i: (i, 0, 0)),      # gamma
                pl.BlockSpec((lb, 1, H), lambda i: (i, 0, 0)),      # beta
                pl.BlockSpec((lb, H, Dout), lambda i: (i, 0, 0)),   # W2 (pre-transposed, bf16)
                pl.BlockSpec((lb, 1, Dout), lambda i: (i, 0, 0)),   # b2
            ],
            out_specs=pl.BlockSpec((lb, N, Dout), lambda i: (i, 0, 0)),
        ),
        compiler_params=pltpu.CompilerParams(
            dimension_semantics=("parallel",),
        ),
    )(x, params["w1"], params["b1"], params["gamma"], params["beta"],
      params["w2"], params["b2"])


def mlp_ms_reference(x, params):
    """Pure-JAX reference mirroring the kernel numerics (bf16 matmul operands,
    f32 accumulation, f32 train-mode BatchNorm1d with biased variance)."""
    h = jnp.einsum("lnd,ldh->lnh", x.astype(jnp.bfloat16), params["w1"],
                   preferred_element_type=jnp.float32) + params["b1"]
    mean = jnp.mean(h, axis=1, keepdims=True)
    var = jnp.mean((h - mean) ** 2, axis=1, keepdims=True)
    h = (h - mean) / jnp.sqrt(var + BN_EPS)
    h = h * params["gamma"] + params["beta"]
    h = jnp.maximum(h, 0.0)
    return jnp.einsum("lnh,lhd->lnd", h.astype(jnp.bfloat16), params["w2"],
                      preferred_element_type=jnp.float32) + params["b2"]


def init_params(key, L, dim_in, hidden, dim_out):
    """Deterministic PyTorch-style init. Weights stored pre-transposed so the
    kernel does x @ W directly, and cast once to bf16 (halves weight DMA)."""
    ks = jax.random.split(key, 4)
    bnd1 = 1.0 / jnp.sqrt(dim_in)
    bnd2 = 1.0 / jnp.sqrt(hidden)
    w1 = jax.random.uniform(ks[0], (L, dim_in, hidden), jnp.float32, -bnd1, bnd1)
    b1 = jax.random.uniform(ks[1], (L, 1, hidden), jnp.float32, -bnd1, bnd1)
    w2 = jax.random.uniform(ks[2], (L, hidden, dim_out), jnp.float32, -bnd2, bnd2)
    b2 = jax.random.uniform(ks[3], (L, 1, dim_out), jnp.float32, -bnd2, bnd2)
    gamma = jnp.ones((L, 1, hidden), jnp.float32)   # BatchNorm1d default affine init
    beta = jnp.zeros((L, 1, hidden), jnp.float32)
    return {"w1": w1.astype(jnp.bfloat16), "b1": b1,
            "gamma": gamma, "beta": beta,
            "w2": w2.astype(jnp.bfloat16), "b2": b2}


if __name__ == "__main__":
    # Small shapes consistent with MLP_MS(dim_in=128, dim_out=128,
    # predictor_hidden_dim=128, multi_level_nums=4, is_shared=False)
    L, N, DIM_IN, HIDDEN, DIM_OUT = 4, 8, 128, 128, 128

    key = jax.random.PRNGKey(0)
    k_x, k_p = jax.random.split(key)
    x = jax.random.normal(k_x, (L, N, DIM_IN), jnp.float32)   # stacked end-to-end
    params = init_params(k_p, L, DIM_IN, HIDDEN, DIM_OUT)

    fwd = jax.jit(mlp_ms_forward)
    out = jax.block_until_ready(fwd(x, params))

    ref = mlp_ms_reference(x, params)
    assert out.shape == (L, N, DIM_OUT)
    assert jnp.allclose(out, ref, atol=2e-3, rtol=2e-3), "mismatch vs reference"

    print("KERNEL_OK")
</pallas_src>

<mosaic_0001>
module attributes {stable_mosaic.version = 11 : i64} {
  func.func @_mlp_ms_kernel(%arg0: i32, %arg1: memref<2x8x128xf32, #tpu.memory_space<vmem>>, %arg2: memref<2x128x128xbf16, #tpu.memory_space<vmem>>, %arg3: memref<2x1x128xf32, #tpu.memory_space<vmem>>, %arg4: memref<2x1x128xf32, #tpu.memory_space<vmem>>, %arg5: memref<2x1x128xf32, #tpu.memory_space<vmem>>, %arg6: memref<2x128x128xbf16, #tpu.memory_space<vmem>>, %arg7: memref<2x1x128xf32, #tpu.memory_space<vmem>>, %arg8: memref<2x8x128xf32, #tpu.memory_space<vmem>>) attributes {dimension_semantics = [#tpu.dimension_semantics<parallel>], iteration_bounds = array<i64: 2>, scalar_prefetch = 0 : i64, scratch_operands = 0 : i64, tpu.core_type = #tpu.core_type<tc>, window_params = [{transform_indices = @transform_0, window_bounds = array<i64: 2, 8, 128>}, {transform_indices = @transform_1, window_bounds = array<i64: 2, 128, 128>}, {transform_indices = @transform_2, window_bounds = array<i64: 2, 1, 128>}, {transform_indices = @transform_3, window_bounds = array<i64: 2, 1, 128>}, {transform_indices = @transform_4, window_bounds = array<i64: 2, 1, 128>}, {transform_indices = @transform_5, window_bounds = array<i64: 2, 128, 128>}, {transform_indices = @transform_6, window_bounds = array<i64: 2, 1, 128>}, {transform_indices = @transform_7, window_bounds = array<i64: 2, 8, 128>}]} {
    %c0 = arith.constant 0 : index
    %c0_0 = arith.constant 0 : index
    %c0_1 = arith.constant 0 : index
    %0 = vector.load %arg1[%c0, %c0_0, %c0_1] : memref<2x8x128xf32, #tpu.memory_space<vmem>>, vector<2x8x128xf32>
    %1 = arith.truncf %0 : vector<2x8x128xf32> to vector<2x8x128xbf16>
    %c0_2 = arith.constant 0 : index
    %c0_3 = arith.constant 0 : index
    %c0_4 = arith.constant 0 : index
    %2 = vector.load %arg2[%c0_2, %c0_3, %c0_4] : memref<2x128x128xbf16, #tpu.memory_space<vmem>>, vector<2x128x128xbf16>
    "tpu.trace_start"() <{level = 10 : i32, message = "lnd,ldh->lnh"}> : () -> ()
    %cst = arith.constant dense<0.000000e+00> : vector<2x8x128xf32>
    %3 = tpu.matmul %1, %2, %cst {dimension_numbers = #tpu.dot_dimension_numbers<[2], [1], [1], [2], [0, 0, 0, 1, 1, 2], [0], [0]>} : vector<2x8x128xbf16>, vector<2x128x128xbf16>, vector<2x8x128xf32> -> vector<2x8x128xf32>
    "tpu.trace_stop"() : () -> ()
    %c0_5 = arith.constant 0 : index
    %c0_6 = arith.constant 0 : index
    %c0_7 = arith.constant 0 : index
    %4 = vector.load %arg3[%c0_5, %c0_6, %c0_7] : memref<2x1x128xf32, #tpu.memory_space<vmem>>, vector<2x1x128xf32>
    %5 = vector.broadcast %4 : vector<2x1x128xf32> to vector<2x8x128xf32>
    %6 = arith.addf %3, %5 : vector<2x8x128xf32>
    %cst_8 = arith.constant dense<0.000000e+00> : vector<2x128xf32>
    %7 = vector.multi_reduction <add>, %6, %cst_8 [1] : vector<2x8x128xf32> to vector<2x128xf32>
    %8 = vector.shape_cast %7 : vector<2x128xf32> to vector<2x1x128xf32>
    %9 = arith.mulf %6, %6 : vector<2x8x128xf32>
    %cst_9 = arith.constant dense<0.000000e+00> : vector<2x128xf32>
    %10 = vector.multi_reduction <add>, %9, %cst_9 [1] : vector<2x8x128xf32> to vector<2x128xf32>
    %11 = vector.shape_cast %10 : vector<2x128xf32> to vector<2x1x128xf32>
    %cst_10 = arith.constant 1.250000e-01 : f32
    %12 = vector.broadcast %cst_10 : f32 to vector<2x1x128xf32>
    %13 = arith.mulf %8, %12 : vector<2x1x128xf32>
    %cst_11 = arith.constant 1.250000e-01 : f32
    %14 = vector.broadcast %cst_11 : f32 to vector<2x1x128xf32>
    %15 = arith.mulf %11, %14 : vector<2x1x128xf32>
    %16 = arith.mulf %13, %13 : vector<2x1x128xf32>
    %17 = arith.subf %15, %16 : vector<2x1x128xf32>
    %cst_12 = arith.constant 0.000000e+00 : f32
    %18 = vector.broadcast %cst_12 : f32 to vector<2x1x128xf32>
    %19 = arith.maximumf %17, %18 : vector<2x1x128xf32>
    %c0_13 = arith.constant 0 : index
    %c0_14 = arith.constant 0 : index
    %c0_15 = arith.constant 0 : index
    %20 = vector.load %arg4[%c0_13, %c0_14, %c0_15] : memref<2x1x128xf32, #tpu.memory_space<vmem>>, vector<2x1x128xf32>
    %cst_16 = arith.constant 9.99999974E-6 : f32
    %21 = vector.broadcast %cst_16 : f32 to vector<2x1x128xf32>
    %22 = arith.addf %19, %21 : vector<2x1x128xf32>
    %23 = math.rsqrt %22 : vector<2x1x128xf32>
    %24 = arith.mulf %20, %23 : vector<2x1x128xf32>
    %c0_17 = arith.constant 0 : index
    %c0_18 = arith.constant 0 : index
    %c0_19 = arith.constant 0 : index
    %25 = vector.load %arg5[%c0_17, %c0_18, %c0_19] : memref<2x1x128xf32, #tpu.memory_space<vmem>>, vector<2x1x128xf32>
    %26 = arith.mulf %13, %24 : vector<2x1x128xf32>
    %27 = arith.subf %25, %26 : vector<2x1x128xf32>
    %28 = vector.broadcast %24 : vector<2x1x128xf32> to vector<2x8x128xf32>
    %29 = arith.mulf %6, %28 : vector<2x8x128xf32>
    %30 = vector.broadcast %27 : vector<2x1x128xf32> to vector<2x8x128xf32>
    %31 = arith.addf %29, %30 : vector<2x8x128xf32>
    %cst_20 = arith.constant 0.000000e+00 : f32
    %32 = vector.broadcast %cst_20 : f32 to vector<2x8x128xf32>
    %33 = arith.maximumf %31, %32 : vector<2x8x128xf32>
    %34 = arith.truncf %33 : vector<2x8x128xf32> to vector<2x8x128xbf16>
    %c0_21 = arith.constant 0 : index
    %c0_22 = arith.constant 0 : index
    %c0_23 = arith.constant 0 : index
    %35 = vector.load %arg6[%c0_21, %c0_22, %c0_23] : memref<2x128x128xbf16, #tpu.memory_space<vmem>>, vector<2x128x128xbf16>
    "tpu.trace_start"() <{level = 10 : i32, message = "lnh,lhd->lnd"}> : () -> ()
    %cst_24 = arith.constant dense<0.000000e+00> : vector<2x8x128xf32>
    %36 = tpu.matmul %34, %35, %cst_24 {dimension_numbers = #tpu.dot_dimension_numbers<[2], [1], [1], [2], [0, 0, 0, 1, 1, 2], [0], [0]>} : vector<2x8x128xbf16>, vector<2x128x128xbf16>, vector<2x8x128xf32> -> vector<2x8x128xf32>
    "tpu.trace_stop"() : () -> ()
    %c0_25 = arith.constant 0 : index
    %c0_26 = arith.constant 0 : index
    %c0_27 = arith.constant 0 : index
    %37 = vector.load %arg7[%c0_25, %c0_26, %c0_27] : memref<2x1x128xf32, #tpu.memory_space<vmem>>, vector<2x1x128xf32>
    %38 = vector.broadcast %37 : vector<2x1x128xf32> to vector<2x8x128xf32>
    %39 = arith.addf %36, %38 : vector<2x8x128xf32>
    %c0_28 = arith.constant 0 : index
    %c0_29 = arith.constant 0 : index
    %c0_30 = arith.constant 0 : index
    %40 = vector.load %arg8[%c0_28, %c0_29, %c0_30] : memref<2x8x128xf32, #tpu.memory_space<vmem>>, vector<2x8x128xf32>
    tpu.vector_store %arg8[%c0_28, %c0_29, %c0_30], %39 {strides = array<i32>} : memref<2x8x128xf32, #tpu.memory_space<vmem>>, vector<2x8x128xf32>,
    return
  }
  func.func @transform_0(%arg0: i32) -> (i32, i32, i32) {
    %c0_i32 = arith.constant 0 : i32
    %c0_i32_0 = arith.constant 0 : i32
    %c0_i32_1 = arith.constant 0 : i32
    return %arg0, %c0_i32, %c0_i32_0 : i32, i32, i32
  }
  func.func @transform_1(%arg0: i32) -> (i32, i32, i32) {
    %c0_i32 = arith.constant 0 : i32
    %c0_i32_0 = arith.constant 0 : i32
    %c0_i32_1 = arith.constant 0 : i32
    return %arg0, %c0_i32, %c0_i32_0 : i32, i32, i32
  }
  func.func @transform_2(%arg0: i32) -> (i32, i32, i32) {
    %c0_i32 = arith.constant 0 : i32
    %c0_i32_0 = arith.constant 0 : i32
    %c0_i32_1 = arith.constant 0 : i32
    return %arg0, %c0_i32, %c0_i32_0 : i32, i32, i32
  }
  func.func @transform_3(%arg0: i32) -> (i32, i32, i32) {
    %c0_i32 = arith.constant 0 : i32
    %c0_i32_0 = arith.constant 0 : i32
    %c0_i32_1 = arith.constant 0 : i32
    return %arg0, %c0_i32, %c0_i32_0 : i32, i32, i32
  }
  func.func @transform_4(%arg0: i32) -> (i32, i32, i32) {
    %c0_i32 = arith.constant 0 : i32
    %c0_i32_0 = arith.constant 0 : i32
    %c0_i32_1 = arith.constant 0 : i32
    return %arg0, %c0_i32, %c0_i32_0 : i32, i32, i32
  }
  func.func @transform_5(%arg0: i32) -> (i32, i32, i32) {
    %c0_i32 = arith.constant 0 : i32
    %c0_i32_0 = arith.constant 0 : i32
    %c0_i32_1 = arith.constant 0 : i32
    return %arg0, %c0_i32, %c0_i32_0 : i32, i32, i32
  }
  func.func @transform_6(%arg0: i32) -> (i32, i32, i32) {
    %c0_i32 = arith.constant 0 : i32
    %c0_i32_0 = arith.constant 0 : i32
    %c0_i32_1 = arith.constant 0 : i32
    return %arg0, %c0_i32, %c0_i32_0 : i32, i32, i32
  }
  func.func @transform_7(%arg0: i32) -> (i32, i32, i32) {
    %c0_i32 = arith.constant 0 : i32
    %c0_i32_0 = arith.constant 0 : i32
    %c0_i32_1 = arith.constant 0 : i32
    return %arg0, %c0_i32, %c0_i32_0 : i32, i32, i32
  }
}

</mosaic_0001>

<llo_original>
// kernel: mlp_ms_forward.1
$region0: #{mlp_ms_forward.1}
  #allocation0 [shape = 'u32[]', space=smem, size = 0x4, offset = 0x4, fixed_abs, tag = 'smem constant byte address 0x4 - core index']
  #allocation1 [shape = 'u32[72,128]{1,0:T(1,128)}', space=vmem, size = 0x9000, scoped, tag = 'internal scratch']
  %s0 = inlined_call_operand.hbm [shape: f32[4,8,128], index: 0, kind: input, shape index: {}]
  %s1 = inlined_call_operand.hbm [shape: bf16[4,128,128], index: 1, kind: input, shape index: {}]
  %s2 = inlined_call_operand.hbm [shape: f32[4,1,128], index: 2, kind: input, shape index: {}]
  %s3 = inlined_call_operand.hbm [shape: f32[4,1,128], index: 3, kind: input, shape index: {}]
  %s4 = inlined_call_operand.hbm [shape: f32[4,1,128], index: 4, kind: input, shape index: {}]
  %s5 = inlined_call_operand.hbm [shape: bf16[4,128,128], index: 5, kind: input, shape index: {}]
  %s6 = inlined_call_operand.hbm [shape: f32[4,1,128], index: 6, kind: input, shape index: {}]
  %s7 = inlined_call_operand.hbm [shape: f32[4,8,128], index: 7, kind: output, shape index: {}]
  %s8 = sld [smem:[#allocation0]]
  $region89: #{mlp_ms_forward.1} parent=0
    _
  %s10 = ssub.s32 1, %s8
  %s11 = scalar_select 0, %s10, %s8
  $region1: #{mlp_ms_forward.1} parent=0
    #allocation2 [shape = 'u8[16384]{0}', space=vmem, size = 0x4000, scoped, tag = 'input window, operand 0']
    #allocation3 [shape = 's32[2]{0}', space=sflag, size = 0x8, scoped, tag = 'scoped memory for mlp_ms_forward.1']
    #allocation4 [shape = 's32[2]{0}', space=sflag, size = 0x8, scoped, tag = 'scoped memory for mlp_ms_forward.1']
    #allocation5 [shape = 'u8[131072]{0}', space=vmem, size = 0x20000, scoped, tag = 'input window, operand 1']
    #allocation6 [shape = 's32[2]{0}', space=sflag, size = 0x8, scoped, tag = 'scoped memory for mlp_ms_forward.1']
    #allocation7 [shape = 'u8[2048]{0}', space=vmem, size = 0x800, scoped, tag = 'input window, operand 2']
    #allocation8 [shape = 'u8[2048]{0}', space=vmem, size = 0x800, scoped, tag = 'input window, operand 3']
    #allocation9 [shape = 's32[2]{0}', space=sflag, size = 0x8, scoped, tag = 'scoped memory for mlp_ms_forward.1']
    #allocation10 [shape = 'u8[2048]{0}', space=vmem, size = 0x800, scoped, tag = 'input window, operand 4']
    #allocation11 [shape = 'u8[131072]{0}', space=vmem, size = 0x20000, scoped, tag = 'input window, operand 5']
    #allocation12 [shape = 's32[2]{0}', space=sflag, size = 0x8, scoped, tag = 'scoped memory for mlp_ms_forward.1']
    #allocation13 [shape = 'u8[2048]{0}', space=vmem, size = 0x800, scoped, tag = 'input window, operand 6']
    #allocation14 [shape = 'u8[16384]{0}', space=vmem, size = 0x4000, scoped, tag = 'output window, operand 0']
    %12 = vsyncpa [#allocation3], 0
    %s13 = scalar_lea.sflag [#allocation3], 1
    %14 = vsyncpa %s13, 0
    %15 = vsyncpa [#allocation6], 0
    %s16 = scalar_lea.sflag [#allocation6], 1
    %17 = vsyncpa %s16, 0
    %18 = vsyncpa [#allocation9], 0
    %s19 = scalar_lea.sflag [#allocation9], 1
    %20 = vsyncpa %s19, 0
    %21 = vsyncpa [#allocation12], 0
    %s22 = scalar_lea.sflag [#allocation12], 1
    %23 = vsyncpa %s22, 0
    %24 = vsyncpa [#allocation4], 0
    %s25 = scalar_lea.sflag [#allocation4], 1
    %26 = vsyncpa %s25, 0
    loop: start=0, step=1, limit=4
    $region2: #{mlp_ms_forward.1} parent=1 // loop_pre_header
      _
    $region3: #{mlp_ms_forward.1} parent=1 // loop_header
      %s28 = sphi 0, %s32
      %p29 = scmp.ge.s32.totalorder %s28, 4
      %s38 = sphi 0, %s40
      %s41 = sphi 0, %s38
      %s42 = sphi 0, %s41
      %s58 = sphi 0, %s42
      %s64 = sphi 0, %s66
      %s67 = sphi 0, %s64
      %s68 = sphi 0, %s67
      %s84 = sphi 0, %s68
      %s90 = sphi 0, %s92
      %s93 = sphi 0, %s90
      %s94 = sphi 0, %s93
      %s110 = sphi 0, %s94
      %s116 = sphi 0, %s118
      %s119 = sphi 0, %s116
      %s120 = sphi 0, %s119
      %s136 = sphi 0, %s120
      %s142 = sphi 0, %s144
      %s145 = sphi 0, %s142
      %s146 = sphi 0, %s145
      %s162 = sphi 0, %s146
      %s168 = sphi 0, %s170
      %s171 = sphi 0, %s168
      %s172 = sphi 0, %s171
      %s188 = sphi 0, %s172
      %s194 = sphi 0, %s196
      %s197 = sphi 0, %s194
      %s198 = sphi 0, %s197
      %s214 = sphi 0, %s198
      %s220 = sphi 0, %s222
      %s223 = sphi 0, %s220
      %s224 = sphi 0, %s223
      %s240 = sphi 0, %s224
    $region4: #{mlp_ms_forward.1} parent=1 // loop_header_branch
      %31 = sbr.rel (%p29) target = $region8
    $region5: #{mlp_ms_forward.1} parent=1 // loop_body
      %s33 = ssub.s32 %s28, 1
      %s34 = ssub.s32 %s28, 2
      %s35 = sadd.s32 %s28, 1
      %s36 = ssub.s32 %s28, %s35
      %p37 = scmp.eq.s32.totalorder %s36, 0
      %s39 = sadd.s32 %s38, 1
      %s40 = scalar_select %p37, %s38, %s39
      %p43 = pneg %p37
      %p44 = scmp.eq.s32.totalorder %s28, 1
      %p45 = por %p43, %p44
      %p46 = scmp.ne.s32.totalorder %s38, %s41
      %p47 = scmp.eq.s32.totalorder %s28, 0
      %p48 = por %p46, %p47
      %p49 = scmp.ne.s32.totalorder %s38, %s41
      %p50 = scmp.eq.s32.totalorder %s33, 1
      %p51 = por %p49, %p50
      %p52 = scmp.ne.s32.totalorder %s41, %s42
      %p53 = scmp.eq.s32.totalorder %s33, 0
      %p54 = por %p52, %p53
      %p55 = scmp.ne.s32.totalorder %s41, %s42
      %p56 = scmp.eq.s32.totalorder %s34, 1
      %p57 = por %p55, %p56
      %p59 = scmp.ne.s32.totalorder %s42, %s58
      %p60 = scmp.eq.s32.totalorder %s34, 0
      %p61 = por %p59, %p60
      %s62 = ssub.s32 %s28, %s35
      %p63 = scmp.eq.s32.totalorder %s62, 0
      %s65 = sadd.s32 %s64, 1
      %s66 = scalar_select %p63, %s64, %s65
      %p69 = pneg %p63
      %p70 = scmp.eq.s32.totalorder %s28, 1
      %p71 = por %p69, %p70
      %p72 = scmp.ne.s32.totalorder %s64, %s67
      %p73 = scmp.eq.s32.totalorder %s28, 0
      %p74 = por %p72, %p73
      %p75 = scmp.ne.s32.totalorder %s64, %s67
      %p76 = scmp.eq.s32.totalorder %s33, 1
      %p77 = por %p75, %p76
      %p78 = scmp.ne.s32.totalorder %s67, %s68
      %p79 = scmp.eq.s32.totalorder %s33, 0
      %p80 = por %p78, %p79
      %p81 = scmp.ne.s32.totalorder %s67, %s68
      %p82 = scmp.eq.s32.totalorder %s34, 1
      %p83 = por %p81, %p82
      %p85 = scmp.ne.s32.totalorder %s68, %s84
      %p86 = scmp.eq.s32.totalorder %s34, 0
      %p87 = por %p85, %p86
      %s88 = ssub.s32 %s28, %s35
      %p89 = scmp.eq.s32.totalorder %s88, 0
      %s91 = sadd.s32 %s90, 1
      %s92 = scalar_select %p89, %s90, %s91
      %p95 = pneg %p89
      %p96 = scmp.eq.s32.totalorder %s28, 1
      %p97 = por %p95, %p96
      %p98 = scmp.ne.s32.totalorder %s90, %s93
      %p99 = scmp.eq.s32.totalorder %s28, 0
      %p100 = por %p98, %p99
      %p101 = scmp.ne.s32.totalorder %s90, %s93
      %p102 = scmp.eq.s32.totalorder %s33, 1
      %p103 = por %p101, %p102
      %p104 = scmp.ne.s32.totalorder %s93, %s94
      %p105 = scmp.eq.s32.totalorder %s33, 0
      %p106 = por %p104, %p105
      %p107 = scmp.ne.s32.totalorder %s93, %s94
      %p108 = scmp.eq.s32.totalorder %s34, 1
      %p109 = por %p107, %p108
      %p111 = scmp.ne.s32.totalorder %s94, %s110
      %p112 = scmp.eq.s32.totalorder %s34, 0
      %p113 = por %p111, %p112
      %s114 = ssub.s32 %s28, %s35
      %p115 = scmp.eq.s32.totalorder %s114, 0
      %s117 = sadd.s32 %s116, 1
      %s118 = scalar_select %p115, %s116, %s117
      %p121 = pneg %p115
      %p122 = scmp.eq.s32.totalorder %s28, 1
      %p123 = por %p121, %p122
      %p124 = scmp.ne.s32.totalorder %s116, %s119
      %p125 = scmp.eq.s32.totalorder %s28, 0
      %p126 = por %p124, %p125
      %p127 = scmp.ne.s32.totalorder %s116, %s119
      %p128 = scmp.eq.s32.totalorder %s33, 1
      %p129 = por %p127, %p128
      %p130 = scmp.ne.s32.totalorder %s119, %s120
      %p131 = scmp.eq.s32.totalorder %s33, 0
      %p132 = por %p130, %p131
      %p133 = scmp.ne.s32.totalorder %s119, %s120
      %p134 = scmp.eq.s32.totalorder %s34, 1
      %p135 = por %p133, %p134
      %p137 = scmp.ne.s32.totalorder %s120, %s136
      %p138 = scmp.eq.s32.totalorder %s34, 0
      %p139 = por %p137, %p138
      %s140 = ssub.s32 %s28, %s35
      %p141 = scmp.eq.s32.totalorder %s140, 0
      %s143 = sadd.s32 %s142, 1
      %s144 = scalar_select %p141, %s142, %s143
      %p147 = pneg %p141
      %p148 = scmp.eq.s32.totalorder %s28, 1
      %p149 = por %p147, %p148
      %p150 = scmp.ne.s32.totalorder %s142, %s145
      %p151 = scmp.eq.s32.totalorder %s28, 0
      %p152 = por %p150, %p151
      %p153 = scmp.ne.s32.totalorder %s142, %s145
      %p154 = scmp.eq.s32.totalorder %s33, 1
      %p155 = por %p153, %p154
      %p156 = scmp.ne.s32.totalorder %s145, %s146
      %p157 = scmp.eq.s32.totalorder %s33, 0
      %p158 = por %p156, %p157
      %p159 = scmp.ne.s32.totalorder %s145, %s146
      %p160 = scmp.eq.s32.totalorder %s34, 1
      %p161 = por %p159, %p160
      %p163 = scmp.ne.s32.totalorder %s146, %s162
      %p164 = scmp.eq.s32.totalorder %s34, 0
      %p165 = por %p163, %p164
      %s166 = ssub.s32 %s28, %s35
      %p167 = scmp.eq.s32.totalorder %s166, 0
      %s169 = sadd.s32 %s168, 1
      %s170 = scalar_select %p167, %s168, %s169
      %p173 = pneg %p167
      %p174 = scmp.eq.s32.totalorder %s28, 1
      %p175 = por %p173, %p174
      %p176 = scmp.ne.s32.totalorder %s168, %s171
      %p177 = scmp.eq.s32.totalorder %s28, 0
      %p178 = por %p176, %p177
      %p179 = scmp.ne.s32.totalorder %s168, %s171
      %p180 = scmp.eq.s32.totalorder %s33, 1
      %p181 = por %p179, %p180
      %p182 = scmp.ne.s32.totalorder %s171, %s172
      %p183 = scmp.eq.s32.totalorder %s33, 0
      %p184 = por %p182, %p183
      %p185 = scmp.ne.s32.totalorder %s171, %s172
      %p186 = scmp.eq.s32.totalorder %s34, 1
      %p187 = por %p185, %p186
      %p189 = scmp.ne.s32.totalorder %s172, %s188
      %p190 = scmp.eq.s32.totalorder %s34, 0
      %p191 = por %p189, %p190
      %s192 = ssub.s32 %s28, %s35
      %p193 = scmp.eq.s32.totalorder %s192, 0
      %s195 = sadd.s32 %s194, 1
      %s196 = scalar_select %p193, %s194, %s195
      %p199 = pneg %p193
      %p200 = scmp.eq.s32.totalorder %s28, 1
      %p201 = por %p199, %p200
      %p202 = scmp.ne.s32.totalorder %s194, %s197
      %p203 = scmp.eq.s32.totalorder %s28, 0
      %p204 = por %p202, %p203
      %p205 = scmp.ne.s32.totalorder %s194, %s197
      %p206 = scmp.eq.s32.totalorder %s33, 1
      %p207 = por %p205, %p206
      %p208 = scmp.ne.s32.totalorder %s197, %s198
      %p209 = scmp.eq.s32.totalorder %s33, 0
      %p210 = por %p208, %p209
      %p211 = scmp.ne.s32.totalorder %s197, %s198
      %p212 = scmp.eq.s32.totalorder %s34, 1
      %p213 = por %p211, %p212
      %p215 = scmp.ne.s32.totalorder %s198, %s214
      %p216 = scmp.eq.s32.totalorder %s34, 0
      %p217 = por %p215, %p216
      %s218 = ssub.s32 %s28, %s35
      %p219 = scmp.eq.s32.totalorder %s218, 0
      %s221 = sadd.s32 %s220, 1
      %s222 = scalar_select %p219, %s220, %s221
      %p225 = pneg %p219
      %p226 = scmp.eq.s32.totalorder %s28, 1
      %p227 = por %p225, %p226
      %p228 = scmp.ne.s32.totalorder %s220, %s223
      %p229 = scmp.eq.s32.totalorder %s28, 0
      %p230 = por %p228, %p229
      %p231 = scmp.ne.s32.totalorder %s220, %s223
      %p232 = scmp.eq.s32.totalorder %s33, 1
      %p233 = por %p231, %p232
      %p234 = scmp.ne.s32.totalorder %s223, %s224
      %p235 = scmp.eq.s32.totalorder %s33, 0
      %p236 = por %p234, %p235
      %p237 = scmp.ne.s32.totalorder %s223, %s224
      %p238 = scmp.eq.s32.totalorder %s34, 1
      %p239 = por %p237, %p238
      %p241 = scmp.ne.s32.totalorder %s224, %s240
      %p242 = scmp.eq.s32.totalorder %s34, 0
      %p243 = por %p241, %p242
      %p244 = scmp.le.s32.totalorder 1, %s28
      %p245 = scmp.lt.s32.totalorder %s28, 3
      %p246 = pnand %p244, %p245
      %p247 = pneg %p246
      // Predicated region
      $region9: #{mlp_ms_forward.1} parent=5 // pred_check
        _
      $region10: #{mlp_ms_forward.1} parent=5 // pred_check_branch
        %249 = sbr.rel (%p246) target = $region12
      $region11: #{mlp_ms_forward.1} parent=5 // pred_region
        %s250 = ssub.s32 %s28, 1
      $region12: #{mlp_ms_forward.1} parent=5 // pred_fallthru
        _
      %p251 = scmp.lt.s32.totalorder %s28, 2
      // Predicated region
      $region13: #{mlp_ms_forward.1} parent=5 // pred_check
        %p252 = pneg %p251
      $region14: #{mlp_ms_forward.1} parent=5 // pred_check_branch
        %254 = sbr.rel (%p252) target = $region16
      $region15: #{mlp_ms_forward.1} parent=5 // pred_region
        // Predicated region
        $region17: #{mlp_ms_forward.1} parent=15 // pred_check
          %p255 = pneg %p48
        $region18: #{mlp_ms_forward.1} parent=15 // pred_check_branch
          %257 = sbr.rel (%p255) target = $region20
        $region19: #{mlp_ms_forward.1} parent=15 // pred_region
          %s258 = sand.u32 %s38, 1
          %s259 = scalar_lea.sflag [#allocation3], %s258
          %s260 = sand.u32 %s38, 1
          %s261 = smul.addr %s260, 16
          %s262 = scalar_lea.vmem [#allocation2], %s261
          %s263 = smul.u32 2, %s28
          %265 = vsyncadd %s259, 0
          %s266 = smul.addr %s263, 8
          %s267 = scalar_lea.hbm %s0, %s266
          %s268 = sshll.u32 %s267, 4
          %s269 = int_to_ptr.hbm [resolvable:$true] %s268
          %s270 = sshll.u32 %s262, 4
          %s271 = int_to_ptr.vmem [resolvable:$true] %s270
          %276 = dma.hbm_to_vmem [thread:$0]  %s269, 256, %s271, %s259, 128, 128, 8
        $region20: #{mlp_ms_forward.1} parent=15 // pred_fallthru
          _
        // Predicated region
        $region21: #{mlp_ms_forward.1} parent=15 // pred_check
          %p277 = pneg %p74
        $region22: #{mlp_ms_forward.1} parent=15 // pred_check_branch
          %279 = sbr.rel (%p277) target = $region24
        $region23: #{mlp_ms_forward.1} parent=15 // pred_region
          %s280 = sand.u32 %s28, 1
          %s281 = scalar_lea.sflag [#allocation6], %s280
          %s282 = sand.u32 %s64, 1
          %s283 = smul.addr %s282, 128
          %s284 = scalar_lea.vmem [#allocation5], %s283
          %s285 = smul.u32 2, %s28
          %287 = vsyncadd %s281, 0
          %s288 = smul.addr %s285, 16
          %s289 = smul.addr %s288, 4
          %s290 = scalar_lea.hbm %s1, %s289
          %s291 = sshll.u32 %s290, 4
          %s292 = int_to_ptr.hbm [resolvable:$true] %s291
          %s293 = sshll.u32 %s284, 4
          %s294 = int_to_ptr.vmem [resolvable:$true] %s293
          %299 = dma.hbm_to_vmem [thread:$0]  %s292, 2048, %s294, %s281, 64, 64, 4
        $region24: #{mlp_ms_forward.1} parent=15 // pred_fallthru
          _
        // Predicated region
        $region25: #{mlp_ms_forward.1} parent=15 // pred_check
          %p300 = pneg %p100
        $region26: #{mlp_ms_forward.1} parent=15 // pred_check_branch
          %302 = sbr.rel (%p300) target = $region28
        $region27: #{mlp_ms_forward.1} parent=15 // pred_region
          %s303 = sand.u32 %s28, 1
          %s304 = scalar_lea.sflag [#allocation6], %s303
          %s305 = sand.u32 %s90, 1
          %s306 = smul.addr %s305, 2
          %s307 = scalar_lea.vmem [#allocation7], %s306
          %s308 = smul.u32 2, %s28
          %310 = vsyncadd %s304, 0
          %s311 = scalar_lea.hbm %s2, %s308
          %s312 = sshll.u32 %s311, 4
          %s313 = int_to_ptr.hbm [resolvable:$true] %s312
          %s314 = sshll.u32 %s307, 4
          %s315 = int_to_ptr.vmem [resolvable:$true] %s314
          %320 = dma.hbm_to_vmem [thread:$0]  %s313, 32, %s315, %s304, 16, 16, 1
        $region28: #{mlp_ms_forward.1} parent=15 // pred_fallthru
          _
        // Predicated region
        $region29: #{mlp_ms_forward.1} parent=15 // pred_check
          %p321 = pneg %p126
        $region30: #{mlp_ms_forward.1} parent=15 // pred_check_branch
          %323 = sbr.rel (%p321) target = $region32
        $region31: #{mlp_ms_forward.1} parent=15 // pred_region
          %s324 = sand.u32 %s28, 1
          %s325 = scalar_lea.sflag [#allocation9], %s324
          %s326 = sand.u32 %s116, 1
          %s327 = smul.addr %s326, 2
          %s328 = scalar_lea.vmem [#allocation8], %s327
          %s329 = smul.u32 2, %s28
          %331 = vsyncadd %s325, 0
          %s332 = scalar_lea.hbm %s3, %s329
          %s333 = sshll.u32 %s332, 4
          %s334 = int_to_ptr.hbm [resolvable:$true] %s333
          %s335 = sshll.u32 %s328, 4
          %s336 = int_to_ptr.vmem [resolvable:$true] %s335
          %341 = dma.hbm_to_vmem [thread:$0]  %s334, 32, %s336, %s325, 16, 16, 1
        $region32: #{mlp_ms_forward.1} parent=15 // pred_fallthru
          _
        // Predicated region
        $region33: #{mlp_ms_forward.1} parent=15 // pred_check
          %p342 = pneg %p152
        $region34: #{mlp_ms_forward.1} parent=15 // pred_check_branch
          %344 = sbr.rel (%p342) target = $region36
        $region35: #{mlp_ms_forward.1} parent=15 // pred_region
          %s345 = sand.u32 %s28, 1
          %s346 = scalar_lea.sflag [#allocation9], %s345
          %s347 = sand.u32 %s142, 1
          %s348 = smul.addr %s347, 2
          %s349 = scalar_lea.vmem [#allocation10], %s348
          %s350 = smul.u32 2, %s28
          %352 = vsyncadd %s346, 0
          %s353 = scalar_lea.hbm %s4, %s350
          %s354 = sshll.u32 %s353, 4
          %s355 = int_to_ptr.hbm [resolvable:$true] %s354
          %s356 = sshll.u32 %s349, 4
          %s357 = int_to_ptr.vmem [resolvable:$true] %s356
          %362 = dma.hbm_to_vmem [thread:$0]  %s355, 32, %s357, %s346, 16, 16, 1
        $region36: #{mlp_ms_forward.1} parent=15 // pred_fallthru
          _
        // Predicated region
        $region37: #{mlp_ms_forward.1} parent=15 // pred_check
          %p363 = pneg %p178
        $region38: #{mlp_ms_forward.1} parent=15 // pred_check_branch
          %365 = sbr.rel (%p363) target = $region40
        $region39: #{mlp_ms_forward.1} parent=15 // pred_region
          %s366 = sand.u32 %s28, 1
          %s367 = scalar_lea.sflag [#allocation12], %s366
          %s368 = sand.u32 %s168, 1
          %s369 = smul.addr %s368, 128
          %s370 = scalar_lea.vmem [#allocation11], %s369
          %s371 = smul.u32 2, %s28
          %373 = vsyncadd %s367, 0
          %s374 = smul.addr %s371, 16
          %s375 = smul.addr %s374, 4
          %s376 = scalar_lea.hbm %s5, %s375
          %s377 = sshll.u32 %s376, 4
          %s378 = int_to_ptr.hbm [resolvable:$true] %s377
          %s379 = sshll.u32 %s370, 4
          %s380 = int_to_ptr.vmem [resolvable:$true] %s379
          %385 = dma.hbm_to_vmem [thread:$0]  %s378, 2048, %s380, %s367, 64, 64, 4
        $region40: #{mlp_ms_forward.1} parent=15 // pred_fallthru
          _
        // Predicated region
        $region41: #{mlp_ms_forward.1} parent=15 // pred_check
          %p386 = pneg %p204
        $region42: #{mlp_ms_forward.1} parent=15 // pred_check_branch
          %388 = sbr.rel (%p386) target = $region44
        $region43: #{mlp_ms_forward.1} parent=15 // pred_region
          %s389 = sand.u32 %s28, 1
          %s390 = scalar_lea.sflag [#allocation12], %s389
          %s391 = sand.u32 %s194, 1
          %s392 = smul.addr %s391, 2
          %s393 = scalar_lea.vmem [#allocation13], %s392
          %s394 = smul.u32 2, %s28
          %396 = vsyncadd %s390, 0
          %s397 = scalar_lea.hbm %s6, %s394
          %s398 = sshll.u32 %s397, 4
          %s399 = int_to_ptr.hbm [resolvable:$true] %s398
          %s400 = sshll.u32 %s393, 4
          %s401 = int_to_ptr.vmem [resolvable:$true] %s400
          %406 = dma.hbm_to_vmem [thread:$0]  %s399, 32, %s401, %s390, 16, 16, 1
        $region44: #{mlp_ms_forward.1} parent=15 // pred_fallthru
          _
      $region16: #{mlp_ms_forward.1} parent=5 // pred_fallthru
        _
      %p407 = scmp.le.s32.totalorder 1, %s28
      %p408 = scmp.lt.s32.totalorder %s28, 3
      %p409 = pnand %p407, %p408
      %p410 = pneg %p409
      // Predicated region
      $region45: #{mlp_ms_forward.1} parent=5 // pred_check
        _
      $region46: #{mlp_ms_forward.1} parent=5 // pred_check_branch
        %412 = sbr.rel (%p409) target = $region48
      $region47: #{mlp_ms_forward.1} parent=5 // pred_region
        %s413 = ssub.s32 %s28, 1
        %s414 = sand.u32 %s41, 1
        %s415 = scalar_lea.sflag [#allocation3], %s414
        %s416 = sand.u32 %s41, 1
        %s417 = smul.addr %s416, 16
        %s418 = scalar_lea.vmem [#allocation2], %s417
        // Predicated region
        $region49: #{mlp_ms_forward.1} parent=47 // pred_check
          %p419 = pneg %p54
        $region50: #{mlp_ms_forward.1} parent=47 // pred_check_branch
          %421 = sbr.rel (%p419) target = $region52
        $region51: #{mlp_ms_forward.1} parent=47 // pred_region
          %423 = dma.done %s415, 256
        $region52: #{mlp_ms_forward.1} parent=47 // pred_fallthru
          _
        %s424 = sand.u32 %s33, 1
        %s425 = scalar_lea.sflag [#allocation6], %s424
        %s426 = sand.u32 %s67, 1
        %s427 = smul.addr %s426, 128
        %s428 = scalar_lea.vmem [#allocation5], %s427
        // Predicated region
        $region53: #{mlp_ms_forward.1} parent=47 // pred_check
          %p429 = pneg %p80
        $region54: #{mlp_ms_forward.1} parent=47 // pred_check_branch
          %431 = sbr.rel (%p429) target = $region56
        $region55: #{mlp_ms_forward.1} parent=47 // pred_region
          %433 = dma.done %s425, 2048
        $region56: #{mlp_ms_forward.1} parent=47 // pred_fallthru
          _
        %s434 = sand.u32 %s33, 1
        %s435 = scalar_lea.sflag [#allocation6], %s434
        %s436 = sand.u32 %s93, 1
        %s437 = smul.addr %s436, 2
        %s438 = scalar_lea.vmem [#allocation7], %s437
        // Predicated region
        $region57: #{mlp_ms_forward.1} parent=47 // pred_check
          %p439 = pneg %p106
        $region58: #{mlp_ms_forward.1} parent=47 // pred_check_branch
          %441 = sbr.rel (%p439) target = $region60
        $region59: #{mlp_ms_forward.1} parent=47 // pred_region
          %443 = dma.done %s435, 32
        $region60: #{mlp_ms_forward.1} parent=47 // pred_fallthru
          _
        %s444 = sand.u32 %s33, 1
        %s445 = scalar_lea.sflag [#allocation9], %s444
        %s446 = sand.u32 %s119, 1
        %s447 = smul.addr %s446, 2
        %s448 = scalar_lea.vmem [#allocation8], %s447
        // Predicated region
        $region61: #{mlp_ms_forward.1} parent=47 // pred_check
          %p449 = pneg %p132
        $region62: #{mlp_ms_forward.1} parent=47 // pred_check_branch
          %451 = sbr.rel (%p449) target = $region64
        $region63: #{mlp_ms_forward.1} parent=47 // pred_region
          %453 = dma.done %s445, 32
        $region64: #{mlp_ms_forward.1} parent=47 // pred_fallthru
          _
        %s454 = sand.u32 %s33, 1
        %s455 = scalar_lea.sflag [#allocation9], %s454
        %s456 = sand.u32 %s145, 1
        %s457 = smul.addr %s456, 2
        %s458 = scalar_lea.vmem [#allocation10], %s457
        // Predicated region
        $region65: #{mlp_ms_forward.1} parent=47 // pred_check
          %p459 = pneg %p158
        $region66: #{mlp_ms_forward.1} parent=47 // pred_check_branch
          %461 = sbr.rel (%p459) target = $region68
        $region67: #{mlp_ms_forward.1} parent=47 // pred_region
          %463 = dma.done %s455, 32
        $region68: #{mlp_ms_forward.1} parent=47 // pred_fallthru
          _
        %s464 = sand.u32 %s33, 1
        %s465 = scalar_lea.sflag [#allocation12], %s464
        %s466 = sand.u32 %s171, 1
        %s467 = smul.addr %s466, 128
        %s468 = scalar_lea.vmem [#allocation11], %s467
        // Predicated region
        $region69: #{mlp_ms_forward.1} parent=47 // pred_check
          %p469 = pneg %p184
        $region70: #{mlp_ms_forward.1} parent=47 // pred_check_branch
          %471 = sbr.rel (%p469) target = $region72
        $region71: #{mlp_ms_forward.1} parent=47 // pred_region
          %473 = dma.done %s465, 2048
        $region72: #{mlp_ms_forward.1} parent=47 // pred_fallthru
          _
        %s474 = sand.u32 %s33, 1
        %s475 = scalar_lea.sflag [#allocation12], %s474
        %s476 = sand.u32 %s197, 1
        %s477 = smul.addr %s476, 2
        %s478 = scalar_lea.vmem [#allocation13], %s477
        // Predicated region
        $region73: #{mlp_ms_forward.1} parent=47 // pred_check
          %p479 = pneg %p210
        $region74: #{mlp_ms_forward.1} parent=47 // pred_check_branch
          %481 = sbr.rel (%p479) target = $region76
        $region75: #{mlp_ms_forward.1} parent=47 // pred_region
          %483 = dma.done %s475, 32
        $region76: #{mlp_ms_forward.1} parent=47 // pred_fallthru
          _
        %s484 = sand.u32 %s41, 1
        %s485 = scalar_lea.sflag [#allocation3], %s484
        %s486 = sand.u32 %s41, 1
        %s487 = smul.addr %s486, 16
        %s488 = scalar_lea.vmem [#allocation2], %s487
        %p489 = pneg %p54
        %p490 = pneg %p51
        %s491 = sand.u32 %s33, 1
        %s492 = scalar_lea.sflag [#allocation6], %s491
        %s493 = sand.u32 %s67, 1
        %s494 = smul.addr %s493, 128
        %s495 = scalar_lea.vmem [#allocation5], %s494
        %p496 = pneg %p80
        %p497 = pneg %p77
        %s498 = sand.u32 %s33, 1
        %s499 = scalar_lea.sflag [#allocation6], %s498
        %s500 = sand.u32 %s93, 1
        %s501 = smul.addr %s500, 2
        %s502 = scalar_lea.vmem [#allocation7], %s501
        %p503 = pneg %p106
        %p504 = pneg %p103
        %s505 = sand.u32 %s33, 1
        %s506 = scalar_lea.sflag [#allocation9], %s505
        %s507 = sand.u32 %s119, 1
        %s508 = smul.addr %s507, 2
        %s509 = scalar_lea.vmem [#allocation8], %s508
        %p510 = pneg %p132
        %p511 = pneg %p129
        %s512 = sand.u32 %s33, 1
        %s513 = scalar_lea.sflag [#allocation9], %s512
        %s514 = sand.u32 %s145, 1
        %s515 = smul.addr %s514, 2
        %s516 = scalar_lea.vmem [#allocation10], %s515
        %p517 = pneg %p158
        %p518 = pneg %p155
        %s519 = sand.u32 %s33, 1
        %s520 = scalar_lea.sflag [#allocation12], %s519
        %s521 = sand.u32 %s171, 1
        %s522 = smul.addr %s521, 128
        %s523 = scalar_lea.vmem [#allocation11], %s522
        %p524 = pneg %p184
        %p525 = pneg %p181
        %s526 = sand.u32 %s33, 1
        %s527 = scalar_lea.sflag [#allocation12], %s526
        %s528 = sand.u32 %s197, 1
        %s529 = smul.addr %s528, 2
        %s530 = scalar_lea.vmem [#allocation13], %s529
        %p531 = pneg %p210
        %p532 = pneg %p207
        %p533 = pneg %p236
        %p534 = pneg %p233
        %s535 = sand.u32 %s223, 1
        %s536 = scalar_lea.sflag [#allocation4], %s535
        %s537 = sand.u32 %s223, 1
        %s538 = smul.addr %s537, 16
        %s539 = scalar_lea.vmem [#allocation14], %s538
        %s540 = smul.u32 2, %s33
        %s541 = smul.u32 2, %s33
        %s542 = smul.u32 2, %s33
        %s543 = smul.u32 2, %s33
        %s544 = smul.u32 2, %s33
        %s545 = smul.u32 2, %s33
        %s546 = smul.u32 2, %s33
        %s547 = smul.u32 2, %s33
        %v548 = vld [vmem:[%s418] sm:$0xff]
        %v549 = vld [vmem:[%s418 + $0x8] sm:$0xff]
        %v550 = vpack.c.bf16 %v548, %v548
        %v551 = vpack.c.bf16 %v549, %v549
        %v552 = vld [vmem:[%s428] sm:$0xf]
        %v553 = vld [vmem:[%s428 + $0x4] sm:$0xf]
        %v554 = vld [vmem:[%s428 + $0x8] sm:$0xf]
        %v555 = vld [vmem:[%s428 + $0xc] sm:$0xf]
        %v556 = vld [vmem:[%s428 + $0x10] sm:$0xf]
        %v557 = vld [vmem:[%s428 + $0x14] sm:$0xf]
        %v558 = vld [vmem:[%s428 + $0x18] sm:$0xf]
        %v559 = vld [vmem:[%s428 + $0x1c] sm:$0xf]
        %v560 = vld [vmem:[%s428 + $0x20] sm:$0xf]
        %v561 = vld [vmem:[%s428 + $0x24] sm:$0xf]
        %v562 = vld [vmem:[%s428 + $0x28] sm:$0xf]
        %v563 = vld [vmem:[%s428 + $0x2c] sm:$0xf]
        %v564 = vld [vmem:[%s428 + $0x30] sm:$0xf]
        %v565 = vld [vmem:[%s428 + $0x34] sm:$0xf]
        %v566 = vld [vmem:[%s428 + $0x38] sm:$0xf]
        %v567 = vld [vmem:[%s428 + $0x3c] sm:$0xf]
        %v568 = vld [vmem:[%s428 + $0x40] sm:$0xf]
        %v569 = vld [vmem:[%s428 + $0x44] sm:$0xf]
        %v570 = vld [vmem:[%s428 + $0x48] sm:$0xf]
        %v571 = vld [vmem:[%s428 + $0x4c] sm:$0xf]
        %v572 = vld [vmem:[%s428 + $0x50] sm:$0xf]
        %v573 = vld [vmem:[%s428 + $0x54] sm:$0xf]
        %v574 = vld [vmem:[%s428 + $0x58] sm:$0xf]
        %v575 = vld [vmem:[%s428 + $0x5c] sm:$0xf]
        %v576 = vld [vmem:[%s428 + $0x60] sm:$0xf]
        %v577 = vld [vmem:[%s428 + $0x64] sm:$0xf]
        %v578 = vld [vmem:[%s428 + $0x68] sm:$0xf]
        %v579 = vld [vmem:[%s428 + $0x6c] sm:$0xf]
        %v580 = vld [vmem:[%s428 + $0x70] sm:$0xf]
        %v581 = vld [vmem:[%s428 + $0x74] sm:$0xf]
        %v582 = vld [vmem:[%s428 + $0x78] sm:$0xf]
        %v583 = vld [vmem:[%s428 + $0x7c] sm:$0xf]
        %v584 = vld [vmem:[%s438] sm:$0x1]
        %v585 = vld [vmem:[%s438 + $0x1] sm:$0x1]
        %v588 = vperm.slane %v584, 0
        %v589 = vperm.slane %v585, 0
        %v608 = vunpack.c.l.b16 %v552
        %v609 = vunpack.c.l.b16 %v553
        %v610 = vunpack.c.l.b16 %v554
        %v611 = vunpack.c.l.b16 %v555
        %v612 = vunpack.c.l.b16 %v556
        %v613 = vunpack.c.l.b16 %v557
        %v614 = vunpack.c.l.b16 %v558
        %v615 = vunpack.c.l.b16 %v559
        %v616 = vunpack.c.l.b16 %v560
        %v617 = vunpack.c.l.b16 %v561
        %v618 = vunpack.c.l.b16 %v562
        %v619 = vunpack.c.l.b16 %v563
        %v620 = vunpack.c.l.b16 %v564
        %v621 = vunpack.c.l.b16 %v565
        %v622 = vunpack.c.l.b16 %v566
        %v623 = vunpack.c.l.b16 %v567
        %v624 = vpack.c.b16 %v609, %v608
        %v625 = vpack.c.b16 %v611, %v610
        %v626 = vpack.c.b16 %v613, %v612
        %v627 = vpack.c.b16 %v615, %v614
        %v628 = vpack.c.b16 %v617, %v616
        %v629 = vpack.c.b16 %v619, %v618
        %v630 = vpack.c.b16 %v621, %v620
        %v631 = vpack.c.b16 %v623, %v622
        %640 = vmatpush.bf16.msra.mxu0 %v631
        %641 = vmatpush.bf16.msra.mxu0 %v630
        %642 = vmatpush.bf16.msra.mxu0 %v629
        %643 = vmatpush.bf16.msra.mxu0 %v628
        %644 = vmatpush.bf16.msra.mxu0 %v627
        %645 = vmatpush.bf16.msra.mxu0 %v626
        %646 = vmatpush.bf16.msra.mxu0 %v625
        %647 = vmatpush.bf16.msra.mxu0 %v624
        %648 = vmatmul.bf16.gmra.mxu0 %v550
        %v649 = vpop.f32.mrf.mxu0
        %v650 = vadd.f32 %v588, %v649
        %v651 = vpop.f32.mrf.mxu0
        %652 = vdwg.mxu0
        %v669 = vunpack.c.l.b16 %v568
        %v670 = vunpack.c.l.b16 %v569
        %v671 = vunpack.c.l.b16 %v570
        %v672 = vunpack.c.l.b16 %v571
        %v673 = vunpack.c.l.b16 %v572
        %v674 = vunpack.c.l.b16 %v573
        %v675 = vunpack.c.l.b16 %v574
        %v676 = vunpack.c.l.b16 %v575
        %v677 = vunpack.c.l.b16 %v576
        %v678 = vunpack.c.l.b16 %v577
        %v679 = vunpack.c.l.b16 %v578
        %v680 = vunpack.c.l.b16 %v579
        %v681 = vunpack.c.l.b16 %v580
        %v682 = vunpack.c.l.b16 %v581
        %v683 = vunpack.c.l.b16 %v582
        %v684 = vunpack.c.l.b16 %v583
        %v685 = vpack.c.b16 %v670, %v669
        %v686 = vpack.c.b16 %v672, %v671
        %v687 = vpack.c.b16 %v674, %v673
        %v688 = vpack.c.b16 %v676, %v675
        %v689 = vpack.c.b16 %v678, %v677
        %v690 = vpack.c.b16 %v680, %v679
        %v691 = vpack.c.b16 %v682, %v681
        %v692 = vpack.c.b16 %v684, %v683
        %701 = vmatpush.bf16.msra.mxu0 %v692
        %702 = vmatpush.bf16.msra.mxu0 %v691
        %703 = vmatpush.bf16.msra.mxu0 %v690
        %704 = vmatpush.bf16.msra.mxu0 %v689
        %705 = vmatpush.bf16.msra.mxu0 %v688
        %706 = vmatpush.bf16.msra.mxu0 %v687
        %707 = vmatpush.bf16.msra.mxu0 %v686
        %708 = vmatpush.bf16.msra.mxu0 %v685
        %709 = vmatmul.bf16.gmra.mxu0 %v551
        %v710 = vpop.f32.mrf.mxu0
        %v711 = vadd.f32 %v589, %v710
        %v712 = vpop.f32.mrf.mxu0
        %713 = vdwg.mxu0
        %v714 = vrot.slane %v650, 4
        %v715 = vadd.f32 %v650, %v714
        %v716 = vrot.slane %v715, 2
        %v717 = vadd.f32 %v715, %v716
        %v718 = vrot.slane %v717, 1
        %v719 = vadd.f32 %v717, %v718
        %v720 = vrot.slane %v711, 4
        %v721 = vadd.f32 %v711, %v720
        %v722 = vrot.slane %v721, 2
        %v723 = vadd.f32 %v721, %v722
        %v724 = vrot.slane %v723, 1
        %v725 = vadd.f32 %v723, %v724
        %v726 = vmul.f32 %v650, %v650
        %v727 = vmul.f32 %v711, %v711
        %v728 = vrot.slane %v726, 4
        %v729 = vadd.f32 %v726, %v728
        %v730 = vrot.slane %v729, 2
        %v731 = vadd.f32 %v729, %v730
        %v732 = vrot.slane %v731, 1
        %v733 = vadd.f32 %v731, %v732
        %v734 = vrot.slane %v727, 4
        %v735 = vadd.f32 %v727, %v734
        %v736 = vrot.slane %v735, 2
        %v737 = vadd.f32 %v735, %v736
        %v738 = vrot.slane %v737, 1
        %v739 = vadd.f32 %v737, %v738
        %v740 = vmul.f32 %v719, 0.125
        %v741 = vmul.f32 %v725, 0.125
        %v742 = vmul.f32 %v733, 0.125
        %v743 = vmul.f32 %v739, 0.125
        %v744 = vmul.f32 %v740, %v740
        %v745 = vmul.f32 %v741, %v741
        %v746 = vsub.f32 %v742, %v744
        %v747 = vsub.f32 %v743, %v745
        %v748 = vmax.f32 %v746, 0.0
        %v749 = vmax.f32 %v747, 0.0
        %v750 = vld [vmem:[%s448] sm:$0x1]
        %v751 = vld [vmem:[%s448 + $0x1] sm:$0x1]
        %v752 = vadd.f32 %v748, 1e-05
        %v753 = vadd.f32 %v749, 1e-05
        %v754 = vrsqrt.pop %v752
        %v755 = vmul.f32 %v754, %v752
        %v756 = vmul.f32 %v755, %v754
        %v757 = vmul.f32 0.5, %v756
        %v758 = vsub.f32 1.5, %v757
        %v759 = vmul.f32 %v754, %v758
        %vm760 = vweird.f32 %v752
        %vm761 = vweird.f32 %v754
        %vm762 = vmor %vm760, %vm761
        %v763 = vsel %vm762, %v754, %v759
        %v764 = vrsqrt.pop %v753
        %v765 = vmul.f32 %v764, %v753
        %v766 = vmul.f32 %v765, %v764
        %v767 = vmul.f32 0.5, %v766
        %v768 = vsub.f32 1.5, %v767
        %v769 = vmul.f32 %v764, %v768
        %vm770 = vweird.f32 %v753
        %vm771 = vweird.f32 %v764
        %vm772 = vmor %vm770, %vm771
        %v773 = vsel %vm772, %v764, %v769
        %v774 = vmul.f32 %v750, %v763
        %v775 = vmul.f32 %v751, %v773
        %v776 = vld [vmem:[%s458] sm:$0x1]
        %v777 = vld [vmem:[%s458 + $0x1] sm:$0x1]
        %v778 = vmul.f32 %v740, %v774
        %v779 = vmul.f32 %v741, %v775
        %v780 = vsub.f32 %v776, %v778
        %v781 = vsub.f32 %v777, %v779
        %v784 = vperm.slane %v774, 0
        %v785 = vperm.slane %v775, 0
        %v788 = vmul.f32 %v650, %v784
        %v789 = vmul.f32 %v711, %v785
        %v792 = vperm.slane %v780, 0
        %v793 = vperm.slane %v781, 0
        %v796 = vadd.f32 %v788, %v792
        %v797 = vadd.f32 %v789, %v793
        %v798 = vmax.f32 %v796, 0.0
        %v799 = vmax.f32 %v797, 0.0
        %v800 = vpack.c.bf16 %v798, %v798
        %v801 = vpack.c.bf16 %v799, %v799
        %v802 = vld [vmem:[%s468] sm:$0xf]
        %v803 = vld [vmem:[%s468 + $0x4] sm:$0xf]
        %v804 = vld [vmem:[%s468 + $0x8] sm:$0xf]
        %v805 = vld [vmem:[%s468 + $0xc] sm:$0xf]
        %v806 = vld [vmem:[%s468 + $0x10] sm:$0xf]
        %v807 = vld [vmem:[%s468 + $0x14] sm:$0xf]
        %v808 = vld [vmem:[%s468 + $0x18] sm:$0xf]
        %v809 = vld [vmem:[%s468 + $0x1c] sm:$0xf]
        %v810 = vld [vmem:[%s468 + $0x20] sm:$0xf]
        %v811 = vld [vmem:[%s468 + $0x24] sm:$0xf]
        %v812 = vld [vmem:[%s468 + $0x28] sm:$0xf]
        %v813 = vld [vmem:[%s468 + $0x2c] sm:$0xf]
        %v814 = vld [vmem:[%s468 + $0x30] sm:$0xf]
        %v815 = vld [vmem:[%s468 + $0x34] sm:$0xf]
        %v816 = vld [vmem:[%s468 + $0x38] sm:$0xf]
        %v817 = vld [vmem:[%s468 + $0x3c] sm:$0xf]
        %v818 = vld [vmem:[%s468 + $0x40] sm:$0xf]
        %v819 = vld [vmem:[%s468 + $0x44] sm:$0xf]
        %v820 = vld [vmem:[%s468 + $0x48] sm:$0xf]
        %v821 = vld [vmem:[%s468 + $0x4c] sm:$0xf]
        %v822 = vld [vmem:[%s468 + $0x50] sm:$0xf]
        %v823 = vld [vmem:[%s468 + $0x54] sm:$0xf]
        %v824 = vld [vmem:[%s468 + $0x58] sm:$0xf]
        %v825 = vld [vmem:[%s468 + $0x5c] sm:$0xf]
        %v826 = vld [vmem:[%s468 + $0x60] sm:$0xf]
        %v827 = vld [vmem:[%s468 + $0x64] sm:$0xf]
        %v828 = vld [vmem:[%s468 + $0x68] sm:$0xf]
        %v829 = vld [vmem:[%s468 + $0x6c] sm:$0xf]
        %v830 = vld [vmem:[%s468 + $0x70] sm:$0xf]
        %v831 = vld [vmem:[%s468 + $0x74] sm:$0xf]
        %v832 = vld [vmem:[%s468 + $0x78] sm:$0xf]
        %v833 = vld [vmem:[%s468 + $0x7c] sm:$0xf]
        %v834 = vld [vmem:[%s478] sm:$0x1]
        %v835 = vld [vmem:[%s478 + $0x1] sm:$0x1]
        %v838 = vperm.slane %v834, 0
        %v839 = vperm.slane %v835, 0
        %v858 = vunpack.c.l.b16 %v802
        %v859 = vunpack.c.l.b16 %v803
        %v860 = vunpack.c.l.b16 %v804
        %v861 = vunpack.c.l.b16 %v805
        %v862 = vunpack.c.l.b16 %v806
        %v863 = vunpack.c.l.b16 %v807
        %v864 = vunpack.c.l.b16 %v808
        %v865 = vunpack.c.l.b16 %v809
        %v866 = vunpack.c.l.b16 %v810
        %v867 = vunpack.c.l.b16 %v811
        %v868 = vunpack.c.l.b16 %v812
        %v869 = vunpack.c.l.b16 %v813
        %v870 = vunpack.c.l.b16 %v814
        %v871 = vunpack.c.l.b16 %v815
        %v872 = vunpack.c.l.b16 %v816
        %v873 = vunpack.c.l.b16 %v817
        %v874 = vpack.c.b16 %v859, %v858
        %v875 = vpack.c.b16 %v861, %v860
        %v876 = vpack.c.b16 %v863, %v862
        %v877 = vpack.c.b16 %v865, %v864
        %v878 = vpack.c.b16 %v867, %v866
        %v879 = vpack.c.b16 %v869, %v868
        %v880 = vpack.c.b16 %v871, %v870
        %v881 = vpack.c.b16 %v873, %v872
        %890 = vmatpush.bf16.msra.mxu0 %v881
        %891 = vmatpush.bf16.msra.mxu0 %v880
        %892 = vmatpush.bf16.msra.mxu0 %v879
        %893 = vmatpush.bf16.msra.mxu0 %v878
        %894 = vmatpush.bf16.msra.mxu0 %v877
        %895 = vmatpush.bf16.msra.mxu0 %v876
        %896 = vmatpush.bf16.msra.mxu0 %v875
        %897 = vmatpush.bf16.msra.mxu0 %v874
        %898 = vmatmul.bf16.gmra.mxu0 %v800
        %v899 = vpop.f32.mrf.mxu0
        %v900 = vadd.f32 %v838, %v899
        %v901 = vpop.f32.mrf.mxu0
        %902 = vdwg.mxu0
        %v919 = vunpack.c.l.b16 %v818
        %v920 = vunpack.c.l.b16 %v819
        %v921 = vunpack.c.l.b16 %v820
        %v922 = vunpack.c.l.b16 %v821
        %v923 = vunpack.c.l.b16 %v822
        %v924 = vunpack.c.l.b16 %v823
        %v925 = vunpack.c.l.b16 %v824
        %v926 = vunpack.c.l.b16 %v825
        %v927 = vunpack.c.l.b16 %v826
        %v928 = vunpack.c.l.b16 %v827
        %v929 = vunpack.c.l.b16 %v828
        %v930 = vunpack.c.l.b16 %v829
        %v931 = vunpack.c.l.b16 %v830
        %v932 = vunpack.c.l.b16 %v831
        %v933 = vunpack.c.l.b16 %v832
        %v934 = vunpack.c.l.b16 %v833
        %v935 = vpack.c.b16 %v920, %v919
        %v936 = vpack.c.b16 %v922, %v921
        %v937 = vpack.c.b16 %v924, %v923
        %v938 = vpack.c.b16 %v926, %v925
        %v939 = vpack.c.b16 %v928, %v927
        %v940 = vpack.c.b16 %v930, %v929
        %v941 = vpack.c.b16 %v932, %v931
        %v942 = vpack.c.b16 %v934, %v933
        %951 = vmatpush.bf16.msra.mxu0 %v942
        %952 = vmatpush.bf16.msra.mxu0 %v941
        %953 = vmatpush.bf16.msra.mxu0 %v940
        %954 = vmatpush.bf16.msra.mxu0 %v939
        %955 = vmatpush.bf16.msra.mxu0 %v938
        %956 = vmatpush.bf16.msra.mxu0 %v937
        %957 = vmatpush.bf16.msra.mxu0 %v936
        %958 = vmatpush.bf16.msra.mxu0 %v935
        %959 = vmatmul.bf16.gmra.mxu0 %v801
        %v960 = vpop.f32.mrf.mxu0
        %v961 = vadd.f32 %v839, %v960
        %v962 = vpop.f32.mrf.mxu0
        %963 = vdwg.mxu0
        %964 = vst [vmem:[%s539] sm:$0xff] %v900
        %965 = vst [vmem:[%s539 + $0x8] sm:$0xff] %v961
        %s966 = sand.u32 %s223, 1
        %s967 = scalar_lea.sflag [#allocation4], %s966
        %s968 = sand.u32 %s223, 1
        %s969 = smul.addr %s968, 16
        %s970 = scalar_lea.vmem [#allocation14], %s969
        // Predicated region
        $region77: #{mlp_ms_forward.1} parent=47 // pred_check
          %p971 = pneg %p233
        $region78: #{mlp_ms_forward.1} parent=47 // pred_check_branch
          %973 = sbr.rel (%p971) target = $region80
        $region79: #{mlp_ms_forward.1} parent=47 // pred_region
          %s974 = smul.u32 2, %s33
          %976 = vsyncadd %s967, 0
          %s977 = smul.addr %s974, 8
          %s978 = scalar_lea.hbm %s7, %s977
          %s979 = sshll.u32 %s970, 4
          %s980 = int_to_ptr.vmem [resolvable:$true] %s979
          %s981 = sshll.u32 %s978, 4
          %s982 = int_to_ptr.hbm [resolvable:$true] %s981
          %987 = dma.vmem_to_hbm [thread:$0]  %s980, 256, %s982, %s967, 128, 128, 8
        $region80: #{mlp_ms_forward.1} parent=47 // pred_fallthru
          _
      $region48: #{mlp_ms_forward.1} parent=5 // pred_fallthru
        _
      %p988 = scmp.le.s32.totalorder 2, %s28
      // Predicated region
      $region81: #{mlp_ms_forward.1} parent=5 // pred_check
        %p989 = pneg %p988
      $region82: #{mlp_ms_forward.1} parent=5 // pred_check_branch
        %991 = sbr.rel (%p989) target = $region84
      $region83: #{mlp_ms_forward.1} parent=5 // pred_region
        %s992 = ssub.s32 %s28, 2
        // Predicated region
        $region85: #{mlp_ms_forward.1} parent=83 // pred_check
          %p993 = pneg %p239
        $region86: #{mlp_ms_forward.1} parent=83 // pred_check_branch
          %995 = sbr.rel (%p993) target = $region88
        $region87: #{mlp_ms_forward.1} parent=83 // pred_region
          %s996 = sand.u32 %s224, 1
          %s997 = scalar_lea.sflag [#allocation4], %s996
          %s998 = sand.u32 %s224, 1
          %s999 = smul.addr %s998, 16
          %s1000 = scalar_lea.vmem [#allocation14], %s999
          %1002 = dma.done %s997, 256
        $region88: #{mlp_ms_forward.1} parent=83 // pred_fallthru
          _
      $region84: #{mlp_ms_forward.1} parent=5 // pred_fallthru
        _
    $region6: #{mlp_ms_forward.1} parent=1 // loop_footer
      %s32 = sadd.s32 1, %s28
    $region7: #{mlp_ms_forward.1} parent=1 // loop_footer_branch
      %27 = sbr.rel target = $region3
    $region8: #{mlp_ms_forward.1} parent=1 // loop_exit
      _
    %1003 = vsyncpa [#allocation3], 1
    %s1004 = scalar_lea.sflag [#allocation3], 1
    %1005 = vsyncpa %s1004, 1
    %1006 = vsyncpa [#allocation6], 1
    %s1007 = scalar_lea.sflag [#allocation6], 1
    %1008 = vsyncpa %s1007, 1
    %1009 = vsyncpa [#allocation9], 1
    %s1010 = scalar_lea.sflag [#allocation9], 1
    %1011 = vsyncpa %s1010, 1
    %1012 = vsyncpa [#allocation12], 1
    %s1013 = scalar_lea.sflag [#allocation12], 1
    %1014 = vsyncpa %s1013, 1
    %1015 = vsyncpa [#allocation4], 1
    %s1016 = scalar_lea.sflag [#allocation4], 1
    %1017 = vsyncpa %s1016, 1

</llo_original>
